<compile_context>
chip_gen: v7x
topology: tpu7x:2x2x1
jax: 0.10.0
libtpu: 0.0.40
codegen_flags: <defaults>
</compile_context>

<pallas_src>
import functools
import math

import jax
import jax.numpy as jnp
from jax.experimental import pallas as pl
from jax.experimental.pallas import tpu as pltpu

_GELU_C = math.sqrt(2.0 / math.pi)
_LN_EPS = 1e-5


def _fused_block_diag_kernel(x_ref, w_ref, b_ref, g_ref, beta_ref,
                             out_ref, rowsum_ref, *,
                             n_chunks, d_model, compute_dtype):
    """Block-diagonal Linear + gelu(tanh) + per-chunk LayerNorm, one token tile.

    x_ref      : (TILE_N, f_total)            f32 tokens (all chunks concatenated)
    w_ref      : (f_total, C*d_model)         bf16 block-diagonal Linear weight
    b_ref      : (1, C*d_model)               f32 concatenated Linear bias
    g_ref      : (1, C*d_model)               f32 concatenated LayerNorm gamma
    beta_ref   : (1, C*d_model)               f32 concatenated LayerNorm beta
    out_ref    : (TILE_N, C*d_model)          fused output (chunk-concatenated)
    rowsum_ref : (TILE_N, C)                  f32 per-chunk row sums (for the mask)
    """
    # Linear (single MXU matmul over all chunks, f32 accumulation).
    x = x_ref[...].astype(compute_dtype)
    y = jnp.dot(x, w_ref[...], preferred_element_type=jnp.float32)
    y = y + b_ref[...]

    # gelu (tanh approximation, exactly as in the torch source).  Kept in f32
    # for v5e (no bf16 VPU/EUP); the EUP tanh slot has plenty of slack here.
    y = 0.5 * y * (1.0 + jnp.tanh(_GELU_C * (y + 0.044715 * (y * y * y))))

    # Dropout: identity in eval mode (p=0.1 in training).
    # TODO(synk): training-mode dropout would need pltpu.prng_seed/prng_random_bits.

    # Per-chunk LayerNorm on static, 128-aligned column slices (free views).
    sums = []
    for c in range(n_chunks):
        lo = c * d_model
        yc = y[:, lo:lo + d_model]
        mean = jnp.mean(yc, axis=-1, keepdims=True)
        cen = yc - mean
        var = jnp.mean(cen * cen, axis=-1, keepdims=True)
        z = cen * jax.lax.rsqrt(var + _LN_EPS)
        z = z * g_ref[:, lo:lo + d_model] + beta_ref[:, lo:lo + d_model]
        # Row sums for the padding mask, in f32 BEFORE any output downcast.
        sums.append(jnp.sum(z, axis=-1, keepdims=True))
        out_ref[:, lo:lo + d_model] = z.astype(out_ref.dtype)
    rowsum_ref[...] = jnp.concatenate(sums, axis=-1)


def init_params(key, d_in_list, d_model):
    """Deterministic parameter init (shapes mirror the torch module)."""
    params = []
    for d_in in d_in_list:
        key, k_w, k_b = jax.random.split(key, 3)
        bound = 1.0 / math.sqrt(d_in)
        # torch stores Linear weight as (d_model, d_in); we keep the transpose.
        w = jax.random.uniform(k_w, (d_in, d_model), jnp.float32, -bound, bound)
        b = jax.random.uniform(k_b, (d_model,), jnp.float32, -bound, bound)
        ln_w = jnp.ones((d_model,), jnp.float32)
        ln_b = jnp.zeros((d_model,), jnp.float32)
        params.append((w, b, ln_w, ln_b))
    return params


def dummy_visual_encoder_forward(x, params, d_in_list, padding_idx, d_model, *,
                                 tile_n=4096, compute_dtype=jnp.bfloat16,
                                 out_dtype=jnp.float32):
    """x: (B, S, sum(d_in)) -> (inputs (B, S, C*d_model), masks (B, 1, 1, C*S))."""
    B, S, f_total = x.shape
    assert f_total == sum(d_in_list)
    n_chunks = len(d_in_list)
    # Lane-aligned per-chunk column slices require 128-aligned d_model when C > 1.
    assert n_chunks == 1 or d_model % 128 == 0, (
        "fused kernel needs d_model % 128 == 0 when there is more than one chunk")
    d_out = n_chunks * d_model
    n_tok = B * S

    # --- Block-diagonal weight (sum(d_in), C*d_model): chunk c's (d_in_c, d_model)
    # weight occupies rows [off_c, off_c+d_in_c), cols [c*d_model, (c+1)*d_model).
    # Zero blocks mean other chunks' input columns contribute nothing, so the
    # math is identical to per-chunk Linears, but the whole module becomes one
    # matmul and the wrapper never pads/stacks the (N, d_in) activations.
    w_bd = jnp.zeros((f_total, d_out), jnp.float32)
    off = 0
    for c, (d_in, (w, _, _, _)) in enumerate(zip(d_in_list, params)):
        w_bd = w_bd.at[off:off + d_in, c * d_model:(c + 1) * d_model].set(w)
        off += d_in
    w_bd = w_bd.astype(compute_dtype)
    b_cat = jnp.concatenate([b for (_, b, _, _) in params]).reshape(1, d_out).astype(jnp.float32)
    g_cat = jnp.concatenate([g for (_, _, g, _) in params]).reshape(1, d_out).astype(jnp.float32)
    beta_cat = jnp.concatenate([bt for (_, _, _, bt) in params]).reshape(1, d_out).astype(jnp.float32)

    x_flat = x.reshape(n_tok, f_total)   # free reshape; kernel casts to bf16 in VMEM

    # --- Token tiling: 2-4K rows amortize the ~0.35us/step pipeline overhead;
    # double-buffered tiles are still only a few MiB of VMEM on every generation.
    if n_tok <= tile_n:
        tn = n_tok                           # block == full dim -> always legal
    else:
        tn = max(16, (tile_n // 16) * 16)    # multiple of 16 (bf16 sublane packing)
    grid = (pl.cdiv(n_tok, tn),)

    kernel = functools.partial(_fused_block_diag_kernel, n_chunks=n_chunks,
                               d_model=d_model, compute_dtype=compute_dtype)

    out, row_sums = pl.pallas_call(
        kernel,
        out_shape=(jax.ShapeDtypeStruct((n_tok, d_out), out_dtype),
                   jax.ShapeDtypeStruct((n_tok, n_chunks), jnp.float32)),
        grid=grid,
        in_specs=[
            pl.BlockSpec((tn, f_total), lambda t: (t, 0)),
            pl.BlockSpec((f_total, d_out), lambda t: (0, 0)),
            pl.BlockSpec((1, d_out), lambda t: (0, 0)),
            pl.BlockSpec((1, d_out), lambda t: (0, 0)),
            pl.BlockSpec((1, d_out), lambda t: (0, 0)),
        ],
        out_specs=[
            pl.BlockSpec((tn, d_out), lambda t: (t, 0)),
            pl.BlockSpec((tn, n_chunks), lambda t: (t, 0)),
        ],
        compiler_params=pltpu.CompilerParams(
            dimension_semantics=("parallel",),
            vmem_limit_bytes=48 * 1024 * 1024,   # safe under v7x's 64 MiB physical
        ),
    )(x_flat, w_bd, b_cat, g_cat, beta_cat)

    inputs = out.reshape(B, S, d_out)

    # Padding mask, faithful to torch: sum(LN output, -1) == padding_idx, chunk
    # major along the last axis.  Row sums come out of the kernel in f32 (before
    # any bf16 downcast) so the mask is independent of out_dtype and the wrapper
    # never re-reads the big fused output.
    # TODO(synk): exact float equality against a ~0 LayerNorm row sum is
    # numerically fragile, but it mirrors the torch module exactly.
    mask = row_sums.reshape(B, S, n_chunks) == padding_idx
    attention_masks = jnp.transpose(mask, (0, 2, 1)).reshape(B, n_chunks * S)
    attention_masks = attention_masks[:, None, None, :]               # (B,1,1,C*S)
    return inputs, attention_masks


def _reference_forward(x, params, d_in_list, padding_idx, d_model, compute_dtype):
    """Pure-JAX reference (same bf16 input/weight rounding as the kernel path)."""
    outs, masks = [], []
    off = 0
    for d_in, (w, b, g, bt) in zip(d_in_list, params):
        chunk = x[:, :, off:off + d_in].astype(compute_dtype).astype(jnp.float32)
        off += d_in
        wf = w.astype(compute_dtype).astype(jnp.float32)
        y = jnp.einsum("bsd,de->bse", chunk, wf) + b.reshape(1, 1, d_model)
        y = 0.5 * y * (1.0 + jnp.tanh(_GELU_C * (y + 0.044715 * y ** 3)))
        mean = y.mean(-1, keepdims=True)
        var = ((y - mean) ** 2).mean(-1, keepdims=True)
        yn = (y - mean) * jax.lax.rsqrt(var + _LN_EPS)
        yn = yn * g.reshape(1, 1, d_model) + bt.reshape(1, 1, d_model)
        outs.append(yn)
        masks.append((yn.sum(-1) == padding_idx)[:, None, None, :])
    return jnp.concatenate(outs, -1), jnp.concatenate(masks, -1)


if __name__ == "__main__":
    # Small shapes consistent with the module: two modalities, 128-wide d_model.
    B, S = 2, 8
    d_in_list = [16, 32]
    d_model = 128
    padding_idx = 0

    key = jax.random.PRNGKey(0)
    key, k_x, k_p = jax.random.split(key, 3)

    x = jax.random.normal(k_x, (B, S, sum(d_in_list)), jnp.float32)
    params = init_params(k_p, d_in_list, d_model)

    # Default path: f32 fused output (matches the torch module's dtype).
    fwd = jax.jit(functools.partial(
        dummy_visual_encoder_forward,
        d_in_list=d_in_list, padding_idx=padding_idx, d_model=d_model))
    inputs, attention_masks = fwd(x, params)
    jax.block_until_ready((inputs, attention_masks))

    assert inputs.shape == (B, S, d_model * len(d_in_list))
    assert inputs.dtype == jnp.float32
    assert attention_masks.shape == (B, 1, 1, S * len(d_in_list))
    assert attention_masks.dtype == jnp.bool_

    ref_inputs, _ = _reference_forward(
        x, params, d_in_list, padding_idx, d_model, jnp.bfloat16)
    max_err = float(jnp.max(jnp.abs(inputs - ref_inputs)))
    assert max_err < 5e-2, f"max abs error vs reference (f32 out): {max_err}"

    # Bandwidth-optimized path: bf16 fused output (halves the dominant HBM write);
    # the padding-mask row sums still come out of the kernel in f32.
    fwd_bf16 = jax.jit(functools.partial(
        dummy_visual_encoder_forward,
        d_in_list=d_in_list, padding_idx=padding_idx, d_model=d_model,
        out_dtype=jnp.bfloat16))
    inputs_bf16, masks_bf16 = fwd_bf16(x, params)
    jax.block_until_ready((inputs_bf16, masks_bf16))
    assert inputs_bf16.dtype == jnp.bfloat16
    assert masks_bf16.shape == (B, 1, 1, S * len(d_in_list))
    max_err_bf16 = float(jnp.max(jnp.abs(
        inputs_bf16.astype(jnp.float32) - ref_inputs)))
    assert max_err_bf16 < 1e-1, f"max abs error vs reference (bf16 out): {max_err_bf16}"

    print("KERNEL_OK")
</pallas_src>

<mosaic_0001>
module attributes {stable_mosaic.version = 11 : i64} {
  func.func @_fused_block_diag_kernel(%arg0: i32, %arg1: memref<16x48xf32, #tpu.memory_space<vmem>>, %arg2: memref<48x256xbf16, #tpu.memory_space<vmem>>, %arg3: memref<1x256xf32, #tpu.memory_space<vmem>>, %arg4: memref<1x256xf32, #tpu.memory_space<vmem>>, %arg5: memref<1x256xf32, #tpu.memory_space<vmem>>, %arg6: memref<16x256xf32, #tpu.memory_space<vmem>>, %arg7: memref<16x2xf32, #tpu.memory_space<vmem>>) attributes {dimension_semantics = [#tpu.dimension_semantics<parallel>], iteration_bounds = array<i64: 1>, scalar_prefetch = 0 : i64, scratch_operands = 0 : i64, tpu.core_type = #tpu.core_type<tc>, window_params = [{transform_indices = @transform_0, window_bounds = array<i64: 16, 48>}, {pipeline_mode = #tpu.pipeline_mode<synchronous>, transform_indices = @transform_1, window_bounds = array<i64: 48, 256>}, {pipeline_mode = #tpu.pipeline_mode<synchronous>, transform_indices = @transform_2, window_bounds = array<i64: 1, 256>}, {pipeline_mode = #tpu.pipeline_mode<synchronous>, transform_indices = @transform_3, window_bounds = array<i64: 1, 256>}, {pipeline_mode = #tpu.pipeline_mode<synchronous>, transform_indices = @transform_4, window_bounds = array<i64: 1, 256>}, {transform_indices = @transform_5, window_bounds = array<i64: 16, 256>}, {transform_indices = @transform_6, window_bounds = array<i64: 16, 2>}]} {
    %c0 = arith.constant 0 : index
    %c0_0 = arith.constant 0 : index
    %0 = vector.load %arg1[%c0, %c0_0] : memref<16x48xf32, #tpu.memory_space<vmem>>, vector<16x48xf32>
    %1 = arith.truncf %0 : vector<16x48xf32> to vector<16x48xbf16>
    %c0_1 = arith.constant 0 : index
    %c0_2 = arith.constant 0 : index
    %2 = vector.load %arg2[%c0_1, %c0_2] : memref<48x256xbf16, #tpu.memory_space<vmem>>, vector<48x256xbf16>
    %cst = arith.constant dense<0.000000e+00> : vector<16x256xf32>
    %3 = tpu.matmul %1, %2, %cst {dimension_numbers = #tpu.dot_dimension_numbers<[1], [0], [0], [1], [0, 0, 1, 1], [], []>} : vector<16x48xbf16>, vector<48x256xbf16>, vector<16x256xf32> -> vector<16x256xf32>
    %c0_3 = arith.constant 0 : index
    %c0_4 = arith.constant 0 : index
    %4 = vector.load %arg3[%c0_3, %c0_4] : memref<1x256xf32, #tpu.memory_space<vmem>>, vector<1x256xf32>
    %5 = vector.broadcast %4 : vector<1x256xf32> to vector<16x256xf32>
    %6 = arith.addf %3, %5 : vector<16x256xf32>
    %cst_5 = arith.constant 5.000000e-01 : f32
    %7 = vector.broadcast %cst_5 : f32 to vector<16x256xf32>
    %8 = arith.mulf %7, %6 : vector<16x256xf32>
    %9 = arith.mulf %6, %6 : vector<16x256xf32>
    %10 = arith.mulf %9, %6 : vector<16x256xf32>
    %cst_6 = arith.constant 4.471500e-02 : f32
    %11 = vector.broadcast %cst_6 : f32 to vector<16x256xf32>
    %12 = arith.mulf %11, %10 : vector<16x256xf32>
    %13 = arith.addf %6, %12 : vector<16x256xf32>
    %cst_7 = arith.constant 0.797884583 : f32
    %14 = vector.broadcast %cst_7 : f32 to vector<16x256xf32>
    %15 = arith.mulf %14, %13 : vector<16x256xf32>
    %16 = math.tanh %15 : vector<16x256xf32>
    %cst_8 = arith.constant 1.000000e+00 : f32
    %17 = vector.broadcast %cst_8 : f32 to vector<16x256xf32>
    %18 = arith.addf %17, %16 : vector<16x256xf32>
    %19 = arith.mulf %8, %18 : vector<16x256xf32>
    %20 = vector.extract_strided_slice %19 {offsets = [0, 0], sizes = [16, 128], strides = [1, 1]} : vector<16x256xf32> to vector<16x128xf32>
    %cst_9 = arith.constant dense<0.000000e+00> : vector<16xf32>
    %21 = vector.multi_reduction <add>, %20, %cst_9 [1] : vector<16x128xf32> to vector<16xf32>
    %22 = vector.shape_cast %21 : vector<16xf32> to vector<16x1xf32>
    %cst_10 = arith.constant 1.280000e+02 : f32
    %23 = vector.broadcast %cst_10 : f32 to vector<16x1xf32>
    %24 = arith.divf %22, %23 : vector<16x1xf32>
    %25 = vector.broadcast %24 : vector<16x1xf32> to vector<16x128xf32>
    %26 = arith.subf %20, %25 : vector<16x128xf32>
    %27 = arith.mulf %26, %26 : vector<16x128xf32>
    %cst_11 = arith.constant dense<0.000000e+00> : vector<16xf32>
    %28 = vector.multi_reduction <add>, %27, %cst_11 [1] : vector<16x128xf32> to vector<16xf32>
    %29 = vector.shape_cast %28 : vector<16xf32> to vector<16x1xf32>
    %cst_12 = arith.constant 1.280000e+02 : f32
    %30 = vector.broadcast %cst_12 : f32 to vector<16x1xf32>
    %31 = arith.divf %29, %30 : vector<16x1xf32>
    %cst_13 = arith.constant 9.99999974E-6 : f32
    %32 = vector.broadcast %cst_13 : f32 to vector<16x1xf32>
    %33 = arith.addf %31, %32 : vector<16x1xf32>
    %34 = math.rsqrt %33 : vector<16x1xf32>
    %35 = vector.broadcast %34 : vector<16x1xf32> to vector<16x128xf32>
    %36 = arith.mulf %26, %35 : vector<16x128xf32>
    %c0_14 = arith.constant 0 : index
    %c0_15 = arith.constant 0 : index
    %37 = vector.load %arg4[%c0_14, %c0_15] : memref<1x256xf32, #tpu.memory_space<vmem>>, vector<1x128xf32>
    %38 = vector.broadcast %37 : vector<1x128xf32> to vector<16x128xf32>
    %39 = arith.mulf %36, %38 : vector<16x128xf32>
    %c0_16 = arith.constant 0 : index
    %c0_17 = arith.constant 0 : index
    %40 = vector.load %arg5[%c0_16, %c0_17] : memref<1x256xf32, #tpu.memory_space<vmem>>, vector<1x128xf32>
    %41 = vector.broadcast %40 : vector<1x128xf32> to vector<16x128xf32>
    %42 = arith.addf %39, %41 : vector<16x128xf32>
    %cst_18 = arith.constant dense<0.000000e+00> : vector<16xf32>
    %43 = vector.multi_reduction <add>, %42, %cst_18 [1] : vector<16x128xf32> to vector<16xf32>
    %44 = vector.shape_cast %43 : vector<16xf32> to vector<16x1xf32>
    %c0_19 = arith.constant 0 : index
    %c0_20 = arith.constant 0 : index
    %45 = vector.load %arg6[%c0_19, %c0_20] : memref<16x256xf32, #tpu.memory_space<vmem>>, vector<16x128xf32>
    tpu.vector_store %arg6[%c0_19, %c0_20], %42 {strides = array<i32>} : memref<16x256xf32, #tpu.memory_space<vmem>>, vector<16x128xf32>,
    %46 = vector.extract_strided_slice %19 {offsets = [0, 128], sizes = [16, 128], strides = [1, 1]} : vector<16x256xf32> to vector<16x128xf32>
    %cst_21 = arith.constant dense<0.000000e+00> : vector<16xf32>
    %47 = vector.multi_reduction <add>, %46, %cst_21 [1] : vector<16x128xf32> to vector<16xf32>
    %48 = vector.shape_cast %47 : vector<16xf32> to vector<16x1xf32>
    %cst_22 = arith.constant 1.280000e+02 : f32
    %49 = vector.broadcast %cst_22 : f32 to vector<16x1xf32>
    %50 = arith.divf %48, %49 : vector<16x1xf32>
    %51 = vector.broadcast %50 : vector<16x1xf32> to vector<16x128xf32>
    %52 = arith.subf %46, %51 : vector<16x128xf32>
    %53 = arith.mulf %52, %52 : vector<16x128xf32>
    %cst_23 = arith.constant dense<0.000000e+00> : vector<16xf32>
    %54 = vector.multi_reduction <add>, %53, %cst_23 [1] : vector<16x128xf32> to vector<16xf32>
    %55 = vector.shape_cast %54 : vector<16xf32> to vector<16x1xf32>
    %cst_24 = arith.constant 1.280000e+02 : f32
    %56 = vector.broadcast %cst_24 : f32 to vector<16x1xf32>
    %57 = arith.divf %55, %56 : vector<16x1xf32>
    %cst_25 = arith.constant 9.99999974E-6 : f32
    %58 = vector.broadcast %cst_25 : f32 to vector<16x1xf32>
    %59 = arith.addf %57, %58 : vector<16x1xf32>
    %60 = math.rsqrt %59 : vector<16x1xf32>
    %61 = vector.broadcast %60 : vector<16x1xf32> to vector<16x128xf32>
    %62 = arith.mulf %52, %61 : vector<16x128xf32>
    %c0_26 = arith.constant 0 : index
    %c128 = arith.constant 128 : index
    %63 = vector.load %arg4[%c0_26, %c128] : memref<1x256xf32, #tpu.memory_space<vmem>>, vector<1x128xf32>
    %64 = vector.broadcast %63 : vector<1x128xf32> to vector<16x128xf32>
    %65 = arith.mulf %62, %64 : vector<16x128xf32>
    %c0_27 = arith.constant 0 : index
    %c128_28 = arith.constant 128 : index
    %66 = vector.load %arg5[%c0_27, %c128_28] : memref<1x256xf32, #tpu.memory_space<vmem>>, vector<1x128xf32>
    %67 = vector.broadcast %66 : vector<1x128xf32> to vector<16x128xf32>
    %68 = arith.addf %65, %67 : vector<16x128xf32>
    %cst_29 = arith.constant dense<0.000000e+00> : vector<16xf32>
    %69 = vector.multi_reduction <add>, %68, %cst_29 [1] : vector<16x128xf32> to vector<16xf32>
    %70 = vector.shape_cast %69 : vector<16xf32> to vector<16x1xf32>
    %c0_30 = arith.constant 0 : index
    %c128_31 = arith.constant 128 : index
    %71 = vector.load %arg6[%c0_30, %c128_31] : memref<16x256xf32, #tpu.memory_space<vmem>>, vector<16x128xf32>
    tpu.vector_store %arg6[%c0_30, %c128_31], %68 {strides = array<i32>} : memref<16x256xf32, #tpu.memory_space<vmem>>, vector<16x128xf32>,
    %72 = tpu.concatenate %44, %70 in 1 : vector<16x1xf32>, vector<16x1xf32> -> vector<16x2xf32>
    %c0_32 = arith.constant 0 : index
    %c0_33 = arith.constant 0 : index
    %73 = vector.load %arg7[%c0_32, %c0_33] : memref<16x2xf32, #tpu.memory_space<vmem>>, vector<16x2xf32>
    tpu.vector_store %arg7[%c0_32, %c0_33], %72 {strides = array<i32>} : memref<16x2xf32, #tpu.memory_space<vmem>>, vector<16x2xf32>,
    return
  }
  func.func @transform_0(%arg0: i32) -> (i32, i32) {
    %c0_i32 = arith.constant 0 : i32
    %c0_i32_0 = arith.constant 0 : i32
    return %arg0, %c0_i32 : i32, i32
  }
  func.func @transform_1(%arg0: i32) -> (i32, i32) {
    %c0_i32 = arith.constant 0 : i32
    %c0_i32_0 = arith.constant 0 : i32
    %c0_i32_1 = arith.constant 0 : i32
    return %c0_i32, %c0_i32_0 : i32, i32
  }
  func.func @transform_2(%arg0: i32) -> (i32, i32) {
    %c0_i32 = arith.constant 0 : i32
    %c0_i32_0 = arith.constant 0 : i32
    %c0_i32_1 = arith.constant 0 : i32
    return %c0_i32, %c0_i32_0 : i32, i32
  }
  func.func @transform_3(%arg0: i32) -> (i32, i32) {
    %c0_i32 = arith.constant 0 : i32
    %c0_i32_0 = arith.constant 0 : i32
    %c0_i32_1 = arith.constant 0 : i32
    return %c0_i32, %c0_i32_0 : i32, i32
  }
  func.func @transform_4(%arg0: i32) -> (i32, i32) {
    %c0_i32 = arith.constant 0 : i32
    %c0_i32_0 = arith.constant 0 : i32
    %c0_i32_1 = arith.constant 0 : i32
    return %c0_i32, %c0_i32_0 : i32, i32
  }
  func.func @transform_5(%arg0: i32) -> (i32, i32) {
    %c0_i32 = arith.constant 0 : i32
    %c0_i32_0 = arith.constant 0 : i32
    return %arg0, %c0_i32 : i32, i32
  }
  func.func @transform_6(%arg0: i32) -> (i32, i32) {
    %c0_i32 = arith.constant 0 : i32
    %c0_i32_0 = arith.constant 0 : i32
    return %arg0, %c0_i32 : i32, i32
  }
}

</mosaic_0001>

<llo_original>
// kernel: dummy_visual_encoder_forward.1
$region0: #{dummy_visual_encoder_forward.1}
  #allocation0 [shape = 'u32[]', space=smem, size = 0x4, offset = 0x4, fixed_abs, tag = 'smem constant byte address 0x4 - core index']
  #allocation1 [shape = 'u32[144,128]{1,0:T(1,128)}', space=vmem, size = 0x12000, scoped, tag = 'internal scratch']
  %s0 = inlined_call_operand.vmem [shape: f32[16,48], index: 0, kind: input, shape index: {}]
  %s1 = inlined_call_operand.vmem [shape: bf16[48,256], index: 1, kind: input, shape index: {}]
  %s2 = inlined_call_operand.vmem [shape: f32[1,256], index: 2, kind: input, shape index: {}]
  %s3 = inlined_call_operand.vmem [shape: f32[1,256], index: 3, kind: input, shape index: {}]
  %s4 = inlined_call_operand.vmem [shape: f32[1,256], index: 4, kind: input, shape index: {}]
  %s5 = inlined_call_operand.hbm [shape: f32[16,256], index: 5, kind: output, shape index: {0}]
  %s6 = inlined_call_operand.vmem [shape: f32[16,2], index: 6, kind: output, shape index: {1}]
  %7 = xla_tuple %s5, %s6
  %s8 = sld [smem:[#allocation0]]
  $region38: #{dummy_visual_encoder_forward.1} parent=0
    _
  %s10 = ssub.s32 1, %s8
  %s11 = scalar_select 0, %s10, %s8
  $region1: #{dummy_visual_encoder_forward.1} parent=0
    #allocation2 [shape = 'u8[16384]{0}', space=vmem, size = 0x4000, scoped, tag = 'output window, operand 0, single buffered']
    #allocation3 [shape = 's32[1]{0}', space=sflag, size = 0x4, scoped, tag = 'scoped memory for dummy_visual_encoder_forward.1']
    %12 = vsyncpa [#allocation3], 0
    // Predicated region
    $region2: #{dummy_visual_encoder_forward.1} parent=1 // pred_check
      _
    $region3: #{dummy_visual_encoder_forward.1} parent=1 // pred_check_branch
      %14 = sbr.rel (0) target = $region5
    $region4: #{dummy_visual_encoder_forward.1} parent=1 // pred_region
      _
    $region5: #{dummy_visual_encoder_forward.1} parent=1 // pred_fallthru
      _
    // Predicated region
    $region6: #{dummy_visual_encoder_forward.1} parent=1 // pred_check
      _
    $region7: #{dummy_visual_encoder_forward.1} parent=1 // pred_check_branch
      %16 = sbr.rel (0) target = $region9
    $region8: #{dummy_visual_encoder_forward.1} parent=1 // pred_region
      _
    $region9: #{dummy_visual_encoder_forward.1} parent=1 // pred_fallthru
      _
    // Predicated region
    $region10: #{dummy_visual_encoder_forward.1} parent=1 // pred_check
      _
    $region11: #{dummy_visual_encoder_forward.1} parent=1 // pred_check_branch
      %18 = sbr.rel (0) target = $region13
    $region12: #{dummy_visual_encoder_forward.1} parent=1 // pred_region
      _
    $region13: #{dummy_visual_encoder_forward.1} parent=1 // pred_fallthru
      _
    // Predicated region
    $region14: #{dummy_visual_encoder_forward.1} parent=1 // pred_check
      _
    $region15: #{dummy_visual_encoder_forward.1} parent=1 // pred_check_branch
      %20 = sbr.rel (0) target = $region17
    $region16: #{dummy_visual_encoder_forward.1} parent=1 // pred_region
      _
    $region17: #{dummy_visual_encoder_forward.1} parent=1 // pred_fallthru
      _
    // Predicated region
    $region18: #{dummy_visual_encoder_forward.1} parent=1 // pred_check
      _
    $region19: #{dummy_visual_encoder_forward.1} parent=1 // pred_check_branch
      %22 = sbr.rel (0) target = $region21
    $region20: #{dummy_visual_encoder_forward.1} parent=1 // pred_region
      _
    $region21: #{dummy_visual_encoder_forward.1} parent=1 // pred_fallthru
      _
    %v24 = vld [vmem:[%s0] sm:$0xff]
    %v25 = vld [vmem:[%s0 + $0x8] sm:$0xff]
    %v26 = vpack.c.bf16 %v25, %v24
    %v27 = vld [vmem:[%s1] sm:$0xff]
    %v28 = vld [vmem:[%s1 + $0x8] sm:$0xff]
    %v29 = vld [vmem:[%s1 + $0x10] sm:$0xff]
    %v30 = vld [vmem:[%s1 + $0x18] sm:$0xff]
    %v31 = vld [vmem:[%s1 + $0x20] sm:$0xff]
    %v32 = vld [vmem:[%s1 + $0x28] sm:$0xff]
    %v33 = vld [vmem:[%s2] sm:$0x3]
    %v35 = vlaneseq
    %v36 = vshrl.u32 %v35, 7
    %v37 = vsub.s32 0, %v36
    %v38 = vrot.slane %v33, %v37
    %v39 = vlaneseq
    %v40 = vshrl.u32 %v39, 7
    %v41 = vsub.s32 1, %v40
    %v42 = vrot.slane %v33, %v41
    %v51 = vunpack.c.l.b16 %v27
    %v52 = vunpack.c.h.b16 %v27
    %v53 = vunpack.c.l.b16 %v28
    %v54 = vunpack.c.h.b16 %v28
    %v55 = vunpack.c.l.b16 %v29
    %v56 = vunpack.c.h.b16 %v29
    %v57 = vunpack.c.l.b16 %v30
    %v58 = vunpack.c.h.b16 %v30
    %v59 = vunpack.c.l.b16 %v31
    %v60 = vunpack.c.h.b16 %v31
    %v61 = vunpack.c.l.b16 %v32
    %v62 = vunpack.c.h.b16 %v32
    %v63 = vpack.c.b16 %v53, %v51
    %v64 = vpack.c.b16 %v54, %v52
    %v65 = vpack.c.b16 %v57, %v55
    %v66 = vpack.c.b16 %v58, %v56
    %v67 = vpack.c.b16 %v61, %v59
    %v68 = vpack.c.b16 %v62, %v60
    %vm75 = vcmask 392192
    %v77 = vsel %vm75, %v26, 0
    %79 = vmatprep.subr.bf16.mxu0 %v64
    %80 = vmatpush1.bf16.msra.mxu0 %v63
    %81 = vmatprep.subr.bf16.mxu0 %v66
    %82 = vmatpush1.bf16.msra.mxu0 %v65
    %83 = vmatprep.subr.bf16.mxu0 %v68
    %84 = vmatpush1.bf16.msra.mxu0 %v67
    %85 = vmatprep.subr.bf16.mxu0 0
    %86 = vmatpush1.bf16.msra.mxu0 0
    %87 = vmatprep.subr.bf16.mxu0 0
    %88 = vmatpush1.bf16.msra.mxu0 0
    %89 = vmatprep.subr.bf16.mxu0 0
    %90 = vmatpush1.bf16.msra.mxu0 0
    %91 = vmatprep.subr.bf16.mxu0 0
    %92 = vmatpush1.bf16.msra.mxu0 0
    %93 = vmatprep.subr.bf16.mxu0 0
    %94 = vmatpush1.bf16.msra.mxu0 0
    %95 = vmatprep.subr.bf16.mxu0 0
    %96 = vmatpush1.bf16.msra.mxu0 0
    %97 = vmatprep.subr.bf16.mxu0 0
    %98 = vmatpush1.bf16.msra.mxu0 0
    %99 = vmatprep.subr.bf16.mxu0 0
    %100 = vmatpush1.bf16.msra.mxu0 0
    %101 = vmatprep.subr.bf16.mxu0 0
    %102 = vmatpush1.bf16.msra.mxu0 0
    %103 = vmatprep.subr.bf16.mxu0 0
    %104 = vmatpush1.bf16.msra.mxu0 0
    %105 = vmatprep.subr.bf16.mxu0 0
    %106 = vmatpush1.bf16.msra.mxu0 0
    %107 = vmatprep.subr.bf16.mxu0 0
    %108 = vmatpush1.bf16.msra.mxu0 0
    %109 = vmatprep.subr.bf16.mxu0 0
    %110 = vmatpush1.bf16.msra.mxu0 0
    %111 = vmatprep.mubr.bf16.mxu0 0
    %112 = vmatmul.mubr.bf16.gmra.mrb[0].mxu0 %v77
    %v113 = vpop.f32.mrb[0].mxu0
    %v114 = vadd.f32 %v38, %v113
    %v115 = vpop.f32.mrb[0].mxu0
    %v116 = vadd.f32 %v42, %v115
    %v117 = vpop.f32.mrb[0].mxu0
    %v118 = vadd.f32 %v38, %v117
    %v119 = vpop.f32.mrb[0].mxu0
    %v120 = vadd.f32 %v42, %v119
    %121 = vdwg.mxu0
    %v122 = vmul.f32 %v114, 0.5
    %v123 = vmul.f32 %v116, 0.5
    %v124 = vmul.f32 %v118, 0.5
    %v125 = vmul.f32 %v120, 0.5
    %v126 = vmul.f32 %v114, %v114
    %v127 = vmul.f32 %v116, %v116
    %v128 = vmul.f32 %v118, %v118
    %v129 = vmul.f32 %v120, %v120
    %v130 = vmul.f32 %v126, %v114
    %v131 = vmul.f32 %v127, %v116
    %v132 = vmul.f32 %v128, %v118
    %v133 = vmul.f32 %v129, %v120
    %v134 = vmul.f32 %v130, 0.044715
    %v135 = vmul.f32 %v131, 0.044715
    %v136 = vmul.f32 %v132, 0.044715
    %v137 = vmul.f32 %v133, 0.044715
    %v138 = vadd.f32 %v114, %v134
    %v139 = vadd.f32 %v116, %v135
    %v140 = vadd.f32 %v118, %v136
    %v141 = vadd.f32 %v120, %v137
    %v142 = vmul.f32 %v138, 0.7978846
    %v143 = vmul.f32 %v139, 0.7978846
    %v144 = vmul.f32 %v140, 0.7978846
    %v145 = vmul.f32 %v141, 0.7978846
    %v146 = vtanh.pop %v142
    %v147 = vtanh.pop %v143
    %v148 = vtanh.pop %v144
    %v149 = vtanh.pop %v145
    %v150 = vadd.f32 %v146, 1.0
    %v151 = vadd.f32 %v147, 1.0
    %v152 = vadd.f32 %v148, 1.0
    %v153 = vadd.f32 %v149, 1.0
    %v154 = vmul.f32 %v122, %v150
    %v155 = vmul.f32 %v123, %v151
    %v156 = vmul.f32 %v124, %v152
    %v157 = vmul.f32 %v125, %v153
    %158 = vadd.xlane.f32.xlu0 %v154
    %v159 = vpop.xlane.xlu0 %158
    %160 = vadd.xlane.f32.xlu0 %v156
    %v161 = vpop.xlane.xlu0 %160
    %v162 = vrcp.pop 128.0
    %v163 = vmul.f32 %v159, %v162
    %v164 = vmul.f32 %v161, %v162
    %v165 = vsub.f32 %v154, %v163
    %v166 = vsub.f32 %v156, %v164
    %v167 = vmul.f32 %v165, %v165
    %v168 = vmul.f32 %v166, %v166
    %169 = vadd.xlane.f32.xlu0 %v167
    %v170 = vpop.xlane.xlu0 %169
    %171 = vadd.xlane.f32.xlu0 %v168
    %v172 = vpop.xlane.xlu0 %171
    %v173 = vmul.f32 %v170, %v162
    %v174 = vmul.f32 %v172, %v162
    %v175 = vadd.f32 %v173, 1e-05
    %v176 = vadd.f32 %v174, 1e-05
    %v177 = vrsqrt.pop %v175
    %v178 = vrsqrt.pop %v176
    %v179 = vmul.f32 %v165, %v177
    %v180 = vmul.f32 %v166, %v178
    %v181 = vld [vmem:[%s3] sm:$0x1]
    %v183 = vlaneseq
    %v184 = vshrl.u32 %v183, 7
    %v185 = vsub.s32 0, %v184
    %v186 = vrot.slane %v181, %v185
    %v188 = vmul.f32 %v179, %v186
    %v189 = vmul.f32 %v180, %v186
    %v190 = vld [vmem:[%s4] sm:$0x1]
    %v192 = vlaneseq
    %v193 = vshrl.u32 %v192, 7
    %v194 = vsub.s32 0, %v193
    %v195 = vrot.slane %v190, %v194
    %v197 = vadd.f32 %v188, %v195
    %v198 = vadd.f32 %v189, %v195
    %199 = vadd.xlane.f32.xlu0 %v197
    %v200 = vpop.xlane.xlu0 %199
    %201 = vadd.xlane.f32.xlu0 %v198
    %v202 = vpop.xlane.xlu0 %201
    %203 = vst [vmem:[#allocation2] sm:$0xff] %v197
    %204 = vst [vmem:[#allocation2 + $0x10] sm:$0xff] %v198
    %205 = vadd.xlane.f32.xlu0 %v155
    %v206 = vpop.xlane.xlu0 %205
    %207 = vadd.xlane.f32.xlu0 %v157
    %v208 = vpop.xlane.xlu0 %207
    %v209 = vmul.f32 %v206, %v162
    %v210 = vmul.f32 %v208, %v162
    %v211 = vsub.f32 %v155, %v209
    %v212 = vsub.f32 %v157, %v210
    %v213 = vmul.f32 %v211, %v211
    %v214 = vmul.f32 %v212, %v212
    %215 = vadd.xlane.f32.xlu0 %v213
    %v216 = vpop.xlane.xlu0 %215
    %217 = vadd.xlane.f32.xlu0 %v214
    %v218 = vpop.xlane.xlu0 %217
    %v219 = vmul.f32 %v216, %v162
    %v220 = vmul.f32 %v218, %v162
    %v221 = vadd.f32 %v219, 1e-05
    %v222 = vadd.f32 %v220, 1e-05
    %v223 = vrsqrt.pop %v221
    %v224 = vrsqrt.pop %v222
    %v225 = vmul.f32 %v211, %v223
    %v226 = vmul.f32 %v212, %v224
    %v227 = vld [vmem:[%s3 + $0x1] sm:$0x1]
    %v229 = vlaneseq
    %v230 = vshrl.u32 %v229, 7
    %v231 = vsub.s32 0, %v230
    %v232 = vrot.slane %v227, %v231
    %v234 = vmul.f32 %v225, %v232
    %v235 = vmul.f32 %v226, %v232
    %v236 = vld [vmem:[%s4 + $0x1] sm:$0x1]
    %v238 = vlaneseq
    %v239 = vshrl.u32 %v238, 7
    %v240 = vsub.s32 0, %v239
    %v241 = vrot.slane %v236, %v240
    %v243 = vadd.f32 %v234, %v241
    %v244 = vadd.f32 %v235, %v241
    %245 = vadd.xlane.f32.xlu0 %v243
    %v246 = vpop.xlane.xlu0 %245
    %247 = vadd.xlane.f32.xlu0 %v244
    %v248 = vpop.xlane.xlu0 %247
    %249 = vst [vmem:[#allocation2 + $0x8] sm:$0xff] %v243
    %250 = vst [vmem:[#allocation2 + $0x18] sm:$0xff] %v244
    %vm251 = vcmask 7168
    %v252 = vsel %vm251, %v200, %v246
    %v253 = vsel %vm251, %v202, %v248
    %vm254 = vcmask 15360
    %255 = vst.msk [vmem:[%s6] sm:$0xff] %vm254, %v252
    %256 = vst.msk [vmem:[%s6 + $0x8] sm:$0xff] %vm254, %v253
    // Predicated region
    $region22: #{dummy_visual_encoder_forward.1} parent=1 // pred_check
      _
    $region23: #{dummy_visual_encoder_forward.1} parent=1 // pred_check_branch
      %258 = sbr.rel (0) target = $region25
    $region24: #{dummy_visual_encoder_forward.1} parent=1 // pred_region
      %s260 = ssub.s32 512, 512
      %261 = vsyncadd [#allocation3], %s260
      %s262 = sshll.u32 [#allocation2], 4
      %s263 = int_to_ptr.vmem [resolvable:$true] %s262
      %268 = dma.vmem_to_hbm [thread:$0]  %s263, 512, %s5, [#allocation3], 256, 256, 16
    $region25: #{dummy_visual_encoder_forward.1} parent=1 // pred_fallthru
      _
    // Predicated region
    $region26: #{dummy_visual_encoder_forward.1} parent=1 // pred_check
      _
    $region27: #{dummy_visual_encoder_forward.1} parent=1 // pred_check_branch
      %270 = sbr.rel (0) target = $region29
    $region28: #{dummy_visual_encoder_forward.1} parent=1 // pred_region
      _
    $region29: #{dummy_visual_encoder_forward.1} parent=1 // pred_fallthru
      _
    // Predicated region
    $region30: #{dummy_visual_encoder_forward.1} parent=1 // pred_check
      _
    $region31: #{dummy_visual_encoder_forward.1} parent=1 // pred_check_branch
      %272 = sbr.rel (0) target = $region33
    $region32: #{dummy_visual_encoder_forward.1} parent=1 // pred_region
      %273 = dma.done [#allocation3], 512
    $region33: #{dummy_visual_encoder_forward.1} parent=1 // pred_fallthru
      _
    // Predicated region
    $region34: #{dummy_visual_encoder_forward.1} parent=1 // pred_check
      _
    $region35: #{dummy_visual_encoder_forward.1} parent=1 // pred_check_branch
      %275 = sbr.rel (0) target = $region37
    $region36: #{dummy_visual_encoder_forward.1} parent=1 // pred_region
      _
    $region37: #{dummy_visual_encoder_forward.1} parent=1 // pred_fallthru
      _
    %276 = vsyncpa [#allocation3], 1

</llo_original>
